<compile_context>
chip_gen: v7x
topology: tpu7x:2x2x1
jax: 0.10.0
libtpu: 0.0.40
codegen_flags: <defaults>
</compile_context>

<pallas_src>
import math
import numpy as np
import jax
import jax.numpy as jnp
from jax.experimental import pallas as pl
from jax.experimental.pallas import tpu as pltpu

SIZE = (15, 10)        # (size0, size1) from the module defaults
CTX_FEATURES = 7
HIDDEN_SIZE = 32
NEAREST_K = 3


def get_id_by_idx(m, n, size=SIZE):
    # TODO(synk): get_id_by_idx is referenced but not defined in the reference
    # source; we use the standard row-major flat station id m*size1 + n.
    return m * size[1] + n


def build_aggregation_matrix(size1_np, size=SIZE, nearest_k=NEAREST_K):
    """Host-side precompute (runs once).  Replicates __init__'s nearest-neighbor
    construction and the forward loop's exact (buggy) semantics, producing A
    with  res_flat[b] = A @ (cv_flat[b] @ W)."""
    s0, s1 = size
    S = s0 * s1

    # __init__: nearest_neighbors[i][j] = nearest_k x (distance, p_id, similarity)
    nn = np.zeros((s0, s1, nearest_k, 3), dtype=np.float32)
    for i in range(s0):
        for j in range(s1):
            ctx = []
            for m in range(s0):
                for n in range(s1):
                    if m != i or n != j:
                        d = math.sqrt((i - m) ** 2 + (j - n) ** 2)
                        p_id = get_id_by_idx(m, n)
                        sim = float(np.exp(-np.abs(size1_np[i, j] - size1_np[m, n])))
                        ctx.append((d, p_id, sim))
            ctx.sort(key=lambda x: x[0])  # stable sort, same as list.sort in torch code
            nn[i, j] = np.asarray(ctx[:nearest_k], dtype=np.float32)

    # forward: exact loop semantics, including mutation of self.nearest_k by
    # the inner loop variable (so after cell (0,0) all inner loops are empty).
    A = np.zeros((S, S), dtype=np.float32)
    k_state = nearest_k
    for i in range(s0 - 1):
        for j in range(s1 - 1):
            for k in range(k_state - 1):
                k_state = k
                p_id = int(nn[i, j, k_state, 1])
                sx = p_id // s0          # note: // size[0], as in the reference
                sy = p_id % s1           # note: %  size[1], as in the reference
                w = float(nn[i, j, k_state, 2])
                A[i * s1 + j, sx * s1 + sy] += w
    return A


def contextual_kernel(a_ref, w_ref, cv_ref, out_ref):
    """Single (un-gridded) invocation.

    a_ref  : (1, S_pad)    f32 -- aggregation weights for cell (0,0) (2 nonzeros)
    w_ref  : (C, H)        f32 -- projection matrix W
    cv_ref : (B, C, S_pad) f32 -- contextual values, station axis on lanes
    out_ref: (B, H, S_pad) f32 -- transposed output, station axis on lanes
    """
    a = a_ref[...]                                      # (1, S_pad)
    cv = cv_ref[...]                                    # (B, C, S_pad)
    # Weighted station mix for the single receiving cell: (B, C).
    combo = jnp.sum(cv * a[None, :, :], axis=-1)
    # Tiny projection on the MXU: (B, C) @ (C, H) -> (B, H).
    h0 = jnp.dot(combo, w_ref[...], preferred_element_type=jnp.float32)
    # Dense, lane-aligned store: lane column 0 (= station (0,0)) gets h0,
    # everything else is zero (faithful to the reference's all-zero rows).
    col = jax.lax.broadcasted_iota(jnp.int32, out_ref.shape, 2)
    h0_b = jnp.broadcast_to(h0[:, :, None], out_ref.shape)
    out_ref[...] = jnp.where(col == 0, h0_b, 0.0)


def contextual_view_forward(contextual_val, W, agg_row):
    """contextual_val: (B, s0, s1, C); W: (C, H); agg_row: (S,) = row 0 of A."""
    B, s0, s1, C = contextual_val.shape
    S = s0 * s1
    Hd = W.shape[1]
    S_pad = ((S + 127) // 128) * 128      # lane-align station axis (150 -> 256)

    # Lane-dense layouts: padded station axis last on both the load and the
    # store paths.  The transpose/pad here are tiny XLA ops in the wrapper.
    cv_T = jnp.transpose(contextual_val.reshape(B, S, C).astype(jnp.float32),
                         (0, 2, 1))                          # (B, C, S)
    cv_T = jnp.pad(cv_T, ((0, 0), (0, 0), (0, S_pad - S)))   # (B, C, S_pad)
    a_pad = jnp.pad(agg_row.astype(jnp.float32), (0, S_pad - S)).reshape(1, S_pad)

    out_T = pl.pallas_call(
        contextual_kernel,
        out_shape=jax.ShapeDtypeStruct((B, Hd, S_pad), jnp.float32),
        in_specs=[
            pl.BlockSpec(memory_space=pltpu.MemorySpace.VMEM),  # a_pad
            pl.BlockSpec(memory_space=pltpu.MemorySpace.VMEM),  # W
            pl.BlockSpec(memory_space=pltpu.MemorySpace.VMEM),  # cv_T
        ],
        out_specs=pl.BlockSpec(memory_space=pltpu.MemorySpace.VMEM),
    )(a_pad, W.astype(jnp.float32), cv_T)

    # (B, H, S_pad) -> (B, s0, s1, H)
    return jnp.transpose(out_T[:, :, :S], (0, 2, 1)).reshape(B, s0, s1, Hd)


if __name__ == "__main__":
    s0, s1 = SIZE
    S = s0 * s1
    B = 2

    # Deterministic "module parameters" (synthetic, no checkpoint loading).
    k_size1, k_W = jax.random.split(jax.random.PRNGKey(42))
    size1_np = np.asarray(jax.random.normal(k_size1, (s0, s1), dtype=jnp.float32))
    W = jax.random.normal(k_W, (CTX_FEATURES, HIDDEN_SIZE), dtype=jnp.float32)

    # Host precompute (plain Python/NumPy glue, runs once).
    A_np = build_aggregation_matrix(size1_np)
    # Because of the reference's `self.nearest_k` mutation, only cell (0,0)
    # (row 0 of A) ever receives contributions -- exploit that sparsity.
    assert not A_np[1:].any(), "expected all rows except cell (0,0) to be zero"
    agg_row = jnp.asarray(A_np[0])        # (S,), exactly 2 nonzeros

    # Deterministic example input.
    contextual_val = jax.random.normal(
        jax.random.PRNGKey(0), (B, s0, s1, CTX_FEATURES), dtype=jnp.float32)

    res = contextual_view_forward(contextual_val, W, agg_row)
    res = jax.block_until_ready(res)

    # Reference check in NumPy against the faithful dense formulation.
    cv_np = np.asarray(contextual_val).reshape(B, S, CTX_FEATURES)
    ref = np.einsum("ps,bsc,ch->bph", A_np, cv_np, np.asarray(W)).reshape(
        B, s0, s1, HIDDEN_SIZE)
    np.testing.assert_allclose(np.asarray(res), ref, rtol=1e-4, atol=1e-4)

    print("KERNEL_OK")
</pallas_src>

<mosaic_0001>
module attributes {stable_mosaic.version = 11 : i64} {
  func.func @contextual_kernel(%arg0: memref<1x256xf32, #tpu.memory_space<vmem>>, %arg1: memref<7x32xf32, #tpu.memory_space<vmem>>, %arg2: memref<2x7x256xf32, #tpu.memory_space<vmem>>, %arg3: memref<2x32x256xf32, #tpu.memory_space<vmem>>) attributes {dimension_semantics = [], scalar_prefetch = 0 : i64, scratch_operands = 0 : i64, tpu.core_type = #tpu.core_type<tc>} {
    %c0 = arith.constant 0 : index
    %c0_0 = arith.constant 0 : index
    %0 = vector.load %arg0[%c0, %c0_0] : memref<1x256xf32, #tpu.memory_space<vmem>>, vector<1x256xf32>
    %c0_1 = arith.constant 0 : index
    %c0_2 = arith.constant 0 : index
    %c0_3 = arith.constant 0 : index
    %1 = vector.load %arg2[%c0_1, %c0_2, %c0_3] : memref<2x7x256xf32, #tpu.memory_space<vmem>>, vector<2x7x256xf32>
    %2 = vector.shape_cast %0 : vector<1x256xf32> to vector<1x1x256xf32>
    %3 = vector.broadcast %2 : vector<1x1x256xf32> to vector<2x7x256xf32>
    %4 = arith.mulf %1, %3 : vector<2x7x256xf32>
    %cst = arith.constant dense<0.000000e+00> : vector<2x7xf32>
    %5 = vector.multi_reduction <add>, %4, %cst [2] : vector<2x7x256xf32> to vector<2x7xf32>
    %c0_4 = arith.constant 0 : index
    %c0_5 = arith.constant 0 : index
    %6 = vector.load %arg1[%c0_4, %c0_5] : memref<7x32xf32, #tpu.memory_space<vmem>>, vector<7x32xf32>
    %cst_6 = arith.constant dense<0.000000e+00> : vector<2x32xf32>
    %7 = tpu.matmul %5, %6, %cst_6 {dimension_numbers = #tpu.dot_dimension_numbers<[1], [0], [0], [1], [0, 0, 1, 1], [], []>} : vector<2x7xf32>, vector<7x32xf32>, vector<2x32xf32> -> vector<2x32xf32>
    %8 = tpu.iota {dimensions = array<i32: 2>} : vector<2x32x256xi32>
    %9 = vector.shape_cast %7 : vector<2x32xf32> to vector<2x32x1xf32>
    %10 = vector.shape_cast %9 : vector<2x32x1xf32> to vector<2x32x1xf32>
    %11 = vector.broadcast %10 : vector<2x32x1xf32> to vector<2x32x256xf32>
    %c0_i32 = arith.constant 0 : i32
    %12 = vector.broadcast %c0_i32 : i32 to vector<2x32x256xi32>
    %13 = arith.cmpi eq, %8, %12 : vector<2x32x256xi32>
    %cst_7 = arith.constant 0.000000e+00 : f32
    %14 = vector.broadcast %cst_7 : f32 to vector<2x32x256xf32>
    %15 = arith.select %13, %11, %14 : vector<2x32x256xi1>, vector<2x32x256xf32>
    %c0_8 = arith.constant 0 : index
    %c0_9 = arith.constant 0 : index
    %c0_10 = arith.constant 0 : index
    %16 = vector.load %arg3[%c0_8, %c0_9, %c0_10] : memref<2x32x256xf32, #tpu.memory_space<vmem>>, vector<2x32x256xf32>
    tpu.vector_store %arg3[%c0_8, %c0_9, %c0_10], %15 {strides = array<i32>} : memref<2x32x256xf32, #tpu.memory_space<vmem>>, vector<2x32x256xf32>,
    return
  }
}

</mosaic_0001>

<llo_original>
// kernel: tpu_custom_call.1
$region0: #{tpu_custom_call.1}
  #allocation0 [shape = 'u32[]', space=smem, size = 0x4, offset = 0x4, fixed_abs, tag = 'smem constant byte address 0x4 - core index']
  #allocation1 [shape = 'u32[144,128]{1,0:T(1,128)}', space=vmem, size = 0x12000, scoped, tag = 'internal scratch']
  %s0 = inlined_call_operand.vmem [shape: f32[1,256], index: 0, kind: input, shape index: {}]
  %s1 = inlined_call_operand.vmem [shape: f32[7,32], index: 1, kind: input, shape index: {}]
  %s2 = inlined_call_operand.vmem [shape: f32[2,7,256], index: 2, kind: input, shape index: {}]
  %s3 = inlined_call_operand.hbm [shape: f32[2,32,256], index: 3, kind: output, shape index: {}]
  %s4 = sld [smem:[#allocation0]]
  $region22: #{tpu_custom_call.1} parent=0
    _
  %s6 = ssub.s32 1, %s4
  %s7 = scalar_select 0, %s6, %s4
  $region1: #{tpu_custom_call.1} parent=0
    #allocation2 [shape = 'u8[65536]{0}', space=vmem, size = 0x10000, scoped, tag = 'output window, operand 0, single buffered']
    #allocation3 [shape = 's32[1]{0}', space=sflag, size = 0x4, scoped, tag = 'scoped memory for tpu_custom_call.1']
    %8 = vsyncpa [#allocation3], 0
    // Predicated region
    $region2: #{tpu_custom_call.1} parent=1 // pred_check
      _
    $region3: #{tpu_custom_call.1} parent=1 // pred_check_branch
      %10 = sbr.rel (0) target = $region5
    $region4: #{tpu_custom_call.1} parent=1 // pred_region
      _
    $region5: #{tpu_custom_call.1} parent=1 // pred_fallthru
      _
    // Predicated region
    $region6: #{tpu_custom_call.1} parent=1 // pred_check
      _
    $region7: #{tpu_custom_call.1} parent=1 // pred_check_branch
      %12 = sbr.rel (0) target = $region9
    $region8: #{tpu_custom_call.1} parent=1 // pred_region
      _
    $region9: #{tpu_custom_call.1} parent=1 // pred_fallthru
      _
    // Predicated region
    $region10: #{tpu_custom_call.1} parent=1 // pred_check
      _
    $region11: #{tpu_custom_call.1} parent=1 // pred_check_branch
      %14 = sbr.rel (0) target = $region13
    $region12: #{tpu_custom_call.1} parent=1 // pred_region
      _
    $region13: #{tpu_custom_call.1} parent=1 // pred_fallthru
      _
    %v15 = vld [vmem:[%s0] sm:$0x3]
    %v16 = vld [vmem:[%s2] sm:$0x7f]
    %v17 = vld [vmem:[%s2 + $0x8] sm:$0x7f]
    %v18 = vld [vmem:[%s2 + $0x10] sm:$0x7f]
    %v19 = vld [vmem:[%s2 + $0x18] sm:$0x7f]
    %v21 = vlaneseq
    %v22 = vshrl.u32 %v21, 7
    %v23 = vsub.s32 0, %v22
    %v24 = vrot.slane %v15, %v23
    %v25 = vlaneseq
    %v26 = vshrl.u32 %v25, 7
    %v27 = vsub.s32 1, %v26
    %v28 = vrot.slane %v15, %v27
    %v31 = vmul.f32 %v16, %v24
    %v32 = vmul.f32 %v17, %v28
    %v33 = vmul.f32 %v18, %v24
    %v34 = vmul.f32 %v19, %v28
    %vm35 = vcmask 1046528
    %v36 = vsel %vm35, %v31, 0.0
    %v37 = vsel %vm35, %v32, 0.0
    %v38 = vadd.f32 %v36, %v37
    %39 = vadd.xlane.f32.xlu0 %v38
    %v40 = vpop.xlane.xlu0 %39
    %v41 = vsel %vm35, %v33, 0.0
    %v42 = vsel %vm35, %v34, 0.0
    %v43 = vadd.f32 %v41, %v42
    %44 = vadd.xlane.f32.xlu0 %v43
    %v45 = vpop.xlane.xlu0 %44
    %v46 = vld [vmem:[%s1] sm:$0x7f]
    %v49 = vlaneseq
    %v50 = vand.u32 %v49, 127
    %v51 = vlaneseq
    %v52 = vshrl.u32 %v51, 7
    %v53 = vsub.s32 %v50, %v52
    %v54 = vrot.slane %v40, %v53
    %v55 = vlaneseq
    %v56 = vshrl.u32 %v55, 7
    %v57 = vsub.s32 %v50, %v56
    %v58 = vrot.slane %v45, %v57
    %vm59 = vcmask 1041409
    %v60 = vsel %vm59, %v58, %v54
    %vm61 = vcmask 56320
    %v62 = vsel %vm61, %v60, 0
    %v65 = vsel %vm35, %v46, 0
    %67 = vmatprep.subr.mxu0 0.0
    %68 = vmatpush1.msra.mxu0 %v65
    %69 = vmatprep.subr.mxu0 0.0
    %70 = vmatpush1.msra.mxu0 0.0
    %71 = vmatprep.subr.mxu0 0.0
    %72 = vmatpush1.msra.mxu0 0.0
    %73 = vmatprep.subr.mxu0 0.0
    %74 = vmatpush1.msra.mxu0 0.0
    %75 = vmatprep.subr.mxu0 0.0
    %76 = vmatpush1.msra.mxu0 0.0
    %77 = vmatprep.subr.mxu0 0.0
    %78 = vmatpush1.msra.mxu0 0.0
    %79 = vmatprep.subr.mxu0 0.0
    %80 = vmatpush1.msra.mxu0 0.0
    %81 = vmatprep.subr.mxu0 0.0
    %82 = vmatpush1.msra.mxu0 0.0
    %83 = vmatprep.subr.mxu0 0.0
    %84 = vmatpush1.msra.mxu0 0.0
    %85 = vmatprep.subr.mxu0 0.0
    %86 = vmatpush1.msra.mxu0 0.0
    %87 = vmatprep.subr.mxu0 0.0
    %88 = vmatpush1.msra.mxu0 0.0
    %89 = vmatprep.subr.mxu0 0.0
    %90 = vmatpush1.msra.mxu0 0.0
    %91 = vmatprep.subr.mxu0 0.0
    %92 = vmatpush1.msra.mxu0 0.0
    %93 = vmatprep.subr.mxu0 0.0
    %94 = vmatpush1.msra.mxu0 0.0
    %95 = vmatprep.subr.mxu0 0.0
    %96 = vmatpush1.msra.mxu0 0.0
    %97 = vmatprep.subr.mxu0 0.0
    %98 = vmatpush1.msra.mxu0 0.0
    %99 = vmatprep.subr.mxu0 0.0
    %100 = vmatpush1.msra.mxu0 0.0
    %101 = vmatprep.subr.mxu0 0.0
    %102 = vmatpush1.msra.mxu0 0.0
    %103 = vmatprep.subr.mxu0 0.0
    %104 = vmatpush1.msra.mxu0 0.0
    %105 = vmatprep.subr.mxu0 0.0
    %106 = vmatpush1.msra.mxu0 0.0
    %107 = vmatprep.subr.mxu0 0.0
    %108 = vmatpush1.msra.mxu0 0.0
    %109 = vmatprep.subr.mxu0 0.0
    %110 = vmatpush1.msra.mxu0 0.0
    %111 = vmatprep.subr.mxu0 0.0
    %112 = vmatpush1.msra.mxu0 0.0
    %113 = vmatprep.subr.mxu0 0.0
    %114 = vmatpush1.msra.mxu0 0.0
    %115 = vmatprep.subr.mxu0 0.0
    %116 = vmatpush1.msra.mxu0 0.0
    %117 = vmatprep.subr.mxu0 0.0
    %118 = vmatpush1.msra.mxu0 0.0
    %119 = vmatprep.subr.mxu0 0.0
    %120 = vmatpush1.msra.mxu0 0.0
    %121 = vmatprep.subr.mxu0 0.0
    %122 = vmatpush1.msra.mxu0 0.0
    %123 = vmatprep.subr.mxu0 0.0
    %124 = vmatpush1.msra.mxu0 0.0
    %125 = vmatprep.subr.mxu0 0.0
    %126 = vmatpush1.msra.mxu0 0.0
    %127 = vmatprep.subr.mxu0 0.0
    %128 = vmatpush1.msra.mxu0 0.0
    %129 = vmatprep.subr.mxu0 0.0
    %130 = vmatpush1.msra.mxu0 0.0
    %131 = vmatprep.mubr.f32.mxu0 0.0
    %132 = vmatmul.mubr.f32.gmra.mrb[0].mxu0 %v62
    %v133 = vpop.f32.mrb[0].mxu0
    %v134 = vadd.f32 0.0, %v133
    %v135 = vpop.f32.mrb[0].mxu0
    %136 = vdwg.mxu0
    %v137 = vadd.s32 %v50, 128
    %v138 = vlaneseq
    %v139 = vshrl.u32 %v138, 7
    %v140 = vsub.s32 0, %v139
    %v141 = vrot.slane %v134, %v140
    %143 = vbcast.lane.b32.xlu0 %v141, 256
    %v144 = vpop.permute.xlu0 %143
    %s146 = sor.u32 256, 8
    %147 = vbcast.lane.b32.xlu0 %v141, %s146
    %v148 = vpop.permute.xlu0 %147
    %s150 = sor.u32 256, 16
    %151 = vbcast.lane.b32.xlu0 %v141, %s150
    %v152 = vpop.permute.xlu0 %151
    %s154 = sor.u32 256, 24
    %155 = vbcast.lane.b32.xlu0 %v141, %s154
    %v156 = vpop.permute.xlu0 %155
    %v157 = vlaneseq
    %v158 = vshrl.u32 %v157, 7
    %v159 = vsub.s32 1, %v158
    %v160 = vrot.slane %v134, %v159
    %162 = vbcast.lane.b32.xlu0 %v160, 256
    %v163 = vpop.permute.xlu0 %162
    %s165 = sor.u32 256, 8
    %166 = vbcast.lane.b32.xlu0 %v160, %s165
    %v167 = vpop.permute.xlu0 %166
    %s169 = sor.u32 256, 16
    %170 = vbcast.lane.b32.xlu0 %v160, %s169
    %v171 = vpop.permute.xlu0 %170
    %s173 = sor.u32 256, 24
    %174 = vbcast.lane.b32.xlu0 %v160, %s173
    %v175 = vpop.permute.xlu0 %174
    %vm176 = vcmp.eq.s32.totalorder %v50, 0
    %vm177 = vcmp.eq.s32.totalorder %v137, 0
    %v178 = vsel %vm176, %v144, 0.0
    %v179 = vsel %vm177, %v144, 0.0
    %v180 = vsel %vm176, %v148, 0.0
    %v181 = vsel %vm177, %v148, 0.0
    %v182 = vsel %vm176, %v152, 0.0
    %v183 = vsel %vm177, %v152, 0.0
    %v184 = vsel %vm176, %v156, 0.0
    %v185 = vsel %vm177, %v156, 0.0
    %v186 = vsel %vm176, %v163, 0.0
    %v187 = vsel %vm177, %v163, 0.0
    %v188 = vsel %vm176, %v167, 0.0
    %v189 = vsel %vm177, %v167, 0.0
    %v190 = vsel %vm176, %v171, 0.0
    %v191 = vsel %vm177, %v171, 0.0
    %v192 = vsel %vm176, %v175, 0.0
    %v193 = vsel %vm177, %v175, 0.0
    %194 = vst [vmem:[#allocation2] sm:$0xff] %v178
    %195 = vst [vmem:[#allocation2 + $0x8] sm:$0xff] %v179
    %196 = vst [vmem:[#allocation2 + $0x10] sm:$0xff] %v180
    %197 = vst [vmem:[#allocation2 + $0x18] sm:$0xff] %v181
    %198 = vst [vmem:[#allocation2 + $0x20] sm:$0xff] %v182
    %199 = vst [vmem:[#allocation2 + $0x28] sm:$0xff] %v183
    %200 = vst [vmem:[#allocation2 + $0x30] sm:$0xff] %v184
    %201 = vst [vmem:[#allocation2 + $0x38] sm:$0xff] %v185
    %202 = vst [vmem:[#allocation2 + $0x40] sm:$0xff] %v186
    %203 = vst [vmem:[#allocation2 + $0x48] sm:$0xff] %v187
    %204 = vst [vmem:[#allocation2 + $0x50] sm:$0xff] %v188
    %205 = vst [vmem:[#allocation2 + $0x58] sm:$0xff] %v189
    %206 = vst [vmem:[#allocation2 + $0x60] sm:$0xff] %v190
    %207 = vst [vmem:[#allocation2 + $0x68] sm:$0xff] %v191
    %208 = vst [vmem:[#allocation2 + $0x70] sm:$0xff] %v192
    %209 = vst [vmem:[#allocation2 + $0x78] sm:$0xff] %v193
    // Predicated region
    $region14: #{tpu_custom_call.1} parent=1 // pred_check
      _
    $region15: #{tpu_custom_call.1} parent=1 // pred_check_branch
      %211 = sbr.rel (0) target = $region17
    $region16: #{tpu_custom_call.1} parent=1 // pred_region
      %s213 = ssub.s32 2048, 2048
      %214 = vsyncadd [#allocation3], %s213
      %s215 = sshll.u32 [#allocation2], 4
      %s216 = int_to_ptr.vmem [resolvable:$true] %s215
      %221 = dma.vmem_to_hbm [thread:$0]  %s216, 2048, %s3, [#allocation3], 256, 256, 16
    $region17: #{tpu_custom_call.1} parent=1 // pred_fallthru
      _
    // Predicated region
    $region18: #{tpu_custom_call.1} parent=1 // pred_check
      _
    $region19: #{tpu_custom_call.1} parent=1 // pred_check_branch
      %223 = sbr.rel (0) target = $region21
    $region20: #{tpu_custom_call.1} parent=1 // pred_region
      %224 = dma.done [#allocation3], 2048
    $region21: #{tpu_custom_call.1} parent=1 // pred_fallthru
      _
    %225 = vsyncpa [#allocation3], 1

</llo_original>
